<compile_context>
chip_gen: v5e
topology: v5e:2x2
jax: 0.10.0
libtpu: 0.0.40
codegen_flags: <defaults>
</compile_context>

<pallas_src>
import functools

import jax
import jax.numpy as jnp
from jax import lax
from jax.experimental import pallas as pl
from jax.experimental.pallas import tpu as pltpu


_VMEM_LIMIT_BYTES = 48 * 1024 * 1024   # < v7x physical 64 MiB; raises v5e/v6e scoped default
_TILE_INPUT_BUDGET = 20 * 1024 * 1024  # double-buffered logits tile budget
_MAX_TILE_C = 4096                     # class-tile size once C is vocab-scale
_MAX_TILE_N = 1024                     # diminishing returns past ~512-1024 rows


def _round_up(x: int, m: int) -> int:
    return pl.cdiv(x, m) * m


def _choose_tiles(n: int, c: int, itemsize: int) -> tuple[int, int]:
    # Class tile: take the full class axis if it is modest, otherwise a large
    # multiple of 128 and run an online logsumexp over class tiles.
    tile_c = c if c <= _MAX_TILE_C else _MAX_TILE_C
    # Batch tile: largest multiple of 8 whose double-buffered logits block fits
    # the budget, capped at _MAX_TILE_N and at the (padded) batch size.
    rows = _TILE_INPUT_BUDGET // (2 * tile_c * itemsize)
    tile_n = max(8, min(_MAX_TILE_N, (rows // 8) * 8))
    tile_n = min(tile_n, _round_up(n, 8))
    return tile_n, tile_c


def _ce_kernel(logits_ref, labels_ref, out_ref, m_ref, l_ref, p_ref, *, total_n):
    # logits_ref: (TILE_N, TILE_C) input dtype
    # labels_ref: (TILE_N, 1) int32 (resident across the class-tile axis)
    # out_ref:    (1, 8, 128) f32 per-batch-tile partial sum (lane-dense block)
    # m/l/p_ref:  (TILE_N, 1) f32 running max / running sum-exp / picked logit
    i = pl.program_id(0)      # batch tile
    j = pl.program_id(1)      # class tile (reduction axis, last)
    tile_n, tile_c = logits_ref.shape

    @pl.when(j == 0)
    def _init():
        m_ref[...] = jnp.full(m_ref.shape, -jnp.inf, dtype=jnp.float32)
        l_ref[...] = jnp.zeros(l_ref.shape, dtype=jnp.float32)
        p_ref[...] = jnp.zeros(p_ref.shape, dtype=jnp.float32)

    logits = logits_ref[...].astype(jnp.float32)          # (TILE_N, TILE_C)
    labels = labels_ref[...]                               # (TILE_N, 1) int32

    # Gather logits[row, y_row] via one-hot against GLOBAL column indices.
    col_ids = j * tile_c + lax.broadcasted_iota(jnp.int32, (tile_n, tile_c), 1)
    onehot = col_ids == labels                              # (TILE_N, TILE_C)
    p_ref[...] += jnp.sum(jnp.where(onehot, logits, 0.0), axis=-1, keepdims=True)

    # Online (numerically stable) logsumexp update.
    m_old = m_ref[...]
    m_new = jnp.maximum(m_old, jnp.max(logits, axis=-1, keepdims=True))
    l_ref[...] = l_ref[...] * jnp.exp(m_old - m_new) + jnp.sum(
        jnp.exp(logits - m_new), axis=-1, keepdims=True)
    m_ref[...] = m_new

    @pl.when(j == pl.num_programs(1) - 1)
    def _finalize():
        lse = m_ref[...] + jnp.log(l_ref[...])              # (TILE_N, 1)
        per_sample = lse - p_ref[...]                        # (TILE_N, 1)
        # Mask batch-padding rows; divide by the TOTAL N in the wrapper.
        row_ids = i * tile_n + lax.broadcasted_iota(jnp.int32, (tile_n, 1), 0)
        valid = row_ids < total_n
        tile_sum = jnp.sum(jnp.where(valid, per_sample, 0.0))
        out_ref[...] = jnp.broadcast_to(tile_sum, out_ref.shape)


def cross_entropy_loss(yhat: jax.Array, y: jax.Array, *, tile_n=None, tile_c=None):
    """Equivalent of nn.CrossEntropyLoss()(yhat, y) for 2-D logits + int targets."""
    n, c = yhat.shape
    itemsize = jnp.dtype(yhat.dtype).itemsize
    auto_tn, auto_tc = _choose_tiles(n, c, itemsize)
    tile_n = auto_tn if tile_n is None else tile_n
    tile_c = auto_tc if tile_c is None else tile_c

    n_pad = _round_up(n, tile_n)
    c_pad = _round_up(c, tile_c)

    # Stream logits in their incoming dtype (bf16 stays bf16 in HBM).
    logits = yhat
    if c_pad != c:
        # Pad classes with a very negative finite value -> exp() == 0, never a target.
        neg = float(jnp.finfo(yhat.dtype).min)
        logits = jnp.pad(logits, ((0, 0), (0, c_pad - c)), constant_values=neg)
    if n_pad != n:
        logits = jnp.pad(logits, ((0, n_pad - n), (0, 0)))

    labels = y.astype(jnp.int32).reshape(n, 1)
    if n_pad != n:
        labels = jnp.pad(labels, ((0, n_pad - n), (0, 0)))

    grid = (n_pad // tile_n, c_pad // tile_c)
    kernel = functools.partial(_ce_kernel, total_n=n)

    partials = pl.pallas_call(
        kernel,
        out_shape=jax.ShapeDtypeStruct((grid[0], 8, 128), jnp.float32),
        grid_spec=pltpu.PrefetchScalarGridSpec(
            num_scalar_prefetch=0,
            grid=grid,
            in_specs=[
                pl.BlockSpec((tile_n, tile_c), lambda i, j: (i, j)),
                pl.BlockSpec((tile_n, 1), lambda i, j: (i, 0)),
            ],
            out_specs=pl.BlockSpec((1, 8, 128), lambda i, j: (i, 0, 0)),
            scratch_shapes=[
                pltpu.VMEM((tile_n, 1), jnp.float32),   # running max
                pltpu.VMEM((tile_n, 1), jnp.float32),   # running sum-exp
                pltpu.VMEM((tile_n, 1), jnp.float32),   # picked logit
            ],
        ),
        compiler_params=pltpu.CompilerParams(
            dimension_semantics=("parallel", "arbitrary"),
            vmem_limit_bytes=_VMEM_LIMIT_BYTES,
        ),
    )(logits, labels)

    # Tiny finalize in JAX: sum per-tile partials, divide by the TOTAL N.
    return jnp.sum(partials[:, 0, 0]) / jnp.float32(n)


def _reference(yhat, y):
    x = yhat.astype(jnp.float32)
    lse = jax.nn.logsumexp(x, axis=-1)
    picked = jnp.take_along_axis(x, y.astype(jnp.int32)[:, None], axis=-1)[:, 0]
    return jnp.mean(lse - picked)


if __name__ == "__main__":
    key = jax.random.PRNGKey(0)

    # Case 1: small, aligned shapes (batch=8, classes=32).
    k1, k2, key = jax.random.split(key, 3)
    yhat1 = jax.random.normal(k1, (8, 32), dtype=jnp.float32)
    y1 = jax.random.randint(k2, (8,), 0, 32, dtype=jnp.int32)
    loss1 = cross_entropy_loss(yhat1, y1)
    jax.block_until_ready(loss1)
    assert jnp.allclose(loss1, _reference(yhat1, y1), atol=1e-5, rtol=1e-5), loss1

    # Case 2: unaligned batch (exercises batch padding + row masking).
    k3, k4, key = jax.random.split(key, 3)
    yhat2 = jax.random.normal(k3, (13, 200), dtype=jnp.float32)
    y2 = jax.random.randint(k4, (13,), 0, 200, dtype=jnp.int32)
    loss2 = cross_entropy_loss(yhat2, y2)
    jax.block_until_ready(loss2)
    assert jnp.allclose(loss2, _reference(yhat2, y2), atol=1e-5, rtol=1e-5), loss2

    # Case 3: force multi-tile grid (exercises online logsumexp across class
    # tiles, class padding, and multiple batch tiles).
    k5, k6, key = jax.random.split(key, 3)
    yhat3 = jax.random.normal(k5, (24, 300), dtype=jnp.float32)
    y3 = jax.random.randint(k6, (24,), 0, 300, dtype=jnp.int32)
    loss3 = cross_entropy_loss(yhat3, y3, tile_n=8, tile_c=128)
    jax.block_until_ready(loss3)
    assert jnp.allclose(loss3, _reference(yhat3, y3), atol=1e-5, rtol=1e-5), loss3

    print("KERNEL_OK")
</pallas_src>

<mosaic_0001>
module attributes {stable_mosaic.version = 11 : i64} {
  func.func @_ce_kernel(%arg0: i32, %arg1: i32, %arg2: memref<8x32xf32, #tpu.memory_space<vmem>>, %arg3: memref<8x1xi32, #tpu.memory_space<vmem>>, %arg4: memref<1x8x128xf32, #tpu.memory_space<vmem>>, %arg5: memref<8x1xf32, #tpu.memory_space<vmem>>, %arg6: memref<8x1xf32, #tpu.memory_space<vmem>>, %arg7: memref<8x1xf32, #tpu.memory_space<vmem>>) attributes {dimension_semantics = [#tpu.dimension_semantics<parallel>, #tpu.dimension_semantics<arbitrary>], iteration_bounds = array<i64: 1, 1>, scalar_prefetch = 0 : i64, scratch_operands = 3 : i64, tpu.core_type = #tpu.core_type<tc>, window_params = [{transform_indices = @transform_0, window_bounds = array<i64: 8, 32>}, {transform_indices = @transform_1, window_bounds = array<i64: 8, 1>}, {transform_indices = @transform_2, window_bounds = array<i64: 1, 8, 128>}]} {
    %c0_i32 = arith.constant 0 : i32
    %0 = arith.cmpi eq, %arg1, %c0_i32 : i32
    %1 = arith.extui %0 : i1 to i32
    %c0_i32_0 = arith.constant 0 : i32
    %2 = arith.cmpi ne, %1, %c0_i32_0 : i32
    scf.if %2 {
      %cst_21 = arith.constant 0xFF800000 : f32
      %37 = vector.broadcast %cst_21 : f32 to vector<8x1xf32>
      %c0_22 = arith.constant 0 : index
      %c0_23 = arith.constant 0 : index
      %38 = vector.load %arg5[%c0_22, %c0_23] : memref<8x1xf32, #tpu.memory_space<vmem>>, vector<8x1xf32>
      tpu.vector_store %arg5[%c0_22, %c0_23], %37 {strides = array<i32>} : memref<8x1xf32, #tpu.memory_space<vmem>>, vector<8x1xf32>,
      %cst_24 = arith.constant 0.000000e+00 : f32
      %39 = vector.broadcast %cst_24 : f32 to vector<8x1xf32>
      %c0_25 = arith.constant 0 : index
      %c0_26 = arith.constant 0 : index
      %40 = vector.load %arg6[%c0_25, %c0_26] : memref<8x1xf32, #tpu.memory_space<vmem>>, vector<8x1xf32>
      tpu.vector_store %arg6[%c0_25, %c0_26], %39 {strides = array<i32>} : memref<8x1xf32, #tpu.memory_space<vmem>>, vector<8x1xf32>,
      %cst_27 = arith.constant 0.000000e+00 : f32
      %41 = vector.broadcast %cst_27 : f32 to vector<8x1xf32>
      %c0_28 = arith.constant 0 : index
      %c0_29 = arith.constant 0 : index
      %42 = vector.load %arg7[%c0_28, %c0_29] : memref<8x1xf32, #tpu.memory_space<vmem>>, vector<8x1xf32>
      tpu.vector_store %arg7[%c0_28, %c0_29], %41 {strides = array<i32>} : memref<8x1xf32, #tpu.memory_space<vmem>>, vector<8x1xf32>,
    } else {
    }
    %c0 = arith.constant 0 : index
    %c0_1 = arith.constant 0 : index
    %3 = vector.load %arg2[%c0, %c0_1] : memref<8x32xf32, #tpu.memory_space<vmem>>, vector<8x32xf32>
    %c0_2 = arith.constant 0 : index
    %c0_3 = arith.constant 0 : index
    %4 = vector.load %arg3[%c0_2, %c0_3] : memref<8x1xi32, #tpu.memory_space<vmem>>, vector<8x1xi32>
    %c32_i32 = arith.constant 32 : i32
    %5 = arith.muli %arg1, %c32_i32 : i32
    %6 = tpu.iota {dimensions = array<i32: 1>} : vector<8x32xi32>
    %7 = vector.broadcast %5 : i32 to vector<8x32xi32>
    %8 = arith.addi %7, %6 : vector<8x32xi32>
    %9 = vector.broadcast %4 : vector<8x1xi32> to vector<8x32xi32>
    %10 = arith.cmpi eq, %8, %9 : vector<8x32xi32>
    %c0_4 = arith.constant 0 : index
    %c0_5 = arith.constant 0 : index
    %11 = vector.load %arg7[%c0_4, %c0_5] : memref<8x1xf32, #tpu.memory_space<vmem>>, vector<8x1xf32>
    %cst = arith.constant 0.000000e+00 : f32
    %12 = vector.broadcast %cst : f32 to vector<8x32xf32>
    %13 = arith.select %10, %3, %12 : vector<8x32xi1>, vector<8x32xf32>
    %cst_6 = arith.constant dense<0.000000e+00> : vector<8xf32>
    %14 = vector.multi_reduction <add>, %13, %cst_6 [1] : vector<8x32xf32> to vector<8xf32>
    %15 = vector.shape_cast %14 : vector<8xf32> to vector<8x1xf32>
    %16 = arith.addf %11, %15 : vector<8x1xf32>
    %c0_7 = arith.constant 0 : index
    %c0_8 = arith.constant 0 : index
    %17 = vector.load %arg7[%c0_7, %c0_8] : memref<8x1xf32, #tpu.memory_space<vmem>>, vector<8x1xf32>
    tpu.vector_store %arg7[%c0_7, %c0_8], %16 {strides = array<i32>} : memref<8x1xf32, #tpu.memory_space<vmem>>, vector<8x1xf32>,
    %c0_9 = arith.constant 0 : index
    %c0_10 = arith.constant 0 : index
    %18 = vector.load %arg5[%c0_9, %c0_10] : memref<8x1xf32, #tpu.memory_space<vmem>>, vector<8x1xf32>
    %cst_11 = arith.constant dense<0xFF800000> : vector<8xf32>
    %19 = vector.multi_reduction <maximumf>, %3, %cst_11 [1] : vector<8x32xf32> to vector<8xf32>
    %20 = vector.shape_cast %19 : vector<8xf32> to vector<8x1xf32>
    %21 = arith.maximumf %18, %20 : vector<8x1xf32>
    %c0_12 = arith.constant 0 : index
    %c0_13 = arith.constant 0 : index
    %22 = vector.load %arg6[%c0_12, %c0_13] : memref<8x1xf32, #tpu.memory_space<vmem>>, vector<8x1xf32>
    %23 = arith.subf %18, %21 : vector<8x1xf32>
    %24 = math.exp %23 : vector<8x1xf32>
    %25 = arith.mulf %22, %24 : vector<8x1xf32>
    %26 = vector.broadcast %21 : vector<8x1xf32> to vector<8x32xf32>
    %27 = arith.subf %3, %26 : vector<8x32xf32>
    %28 = math.exp %27 : vector<8x32xf32>
    %cst_14 = arith.constant dense<0.000000e+00> : vector<8xf32>
    %29 = vector.multi_reduction <add>, %28, %cst_14 [1] : vector<8x32xf32> to vector<8xf32>
    %30 = vector.shape_cast %29 : vector<8xf32> to vector<8x1xf32>
    %31 = arith.addf %25, %30 : vector<8x1xf32>
    %c0_15 = arith.constant 0 : index
    %c0_16 = arith.constant 0 : index
    %32 = vector.load %arg6[%c0_15, %c0_16] : memref<8x1xf32, #tpu.memory_space<vmem>>, vector<8x1xf32>
    tpu.vector_store %arg6[%c0_15, %c0_16], %31 {strides = array<i32>} : memref<8x1xf32, #tpu.memory_space<vmem>>, vector<8x1xf32>,
    %c0_17 = arith.constant 0 : index
    %c0_18 = arith.constant 0 : index
    %33 = vector.load %arg5[%c0_17, %c0_18] : memref<8x1xf32, #tpu.memory_space<vmem>>, vector<8x1xf32>
    tpu.vector_store %arg5[%c0_17, %c0_18], %21 {strides = array<i32>} : memref<8x1xf32, #tpu.memory_space<vmem>>, vector<8x1xf32>,
    %c0_i32_19 = arith.constant 0 : i32
    %34 = arith.cmpi eq, %arg1, %c0_i32_19 : i32
    %35 = arith.extui %34 : i1 to i32
    %c0_i32_20 = arith.constant 0 : i32
    %36 = arith.cmpi ne, %35, %c0_i32_20 : i32
    scf.if %36 {
      %c0_21 = arith.constant 0 : index
      %c0_22 = arith.constant 0 : index
      %37 = vector.load %arg5[%c0_21, %c0_22] : memref<8x1xf32, #tpu.memory_space<vmem>>, vector<8x1xf32>
      %c0_23 = arith.constant 0 : index
      %c0_24 = arith.constant 0 : index
      %38 = vector.load %arg6[%c0_23, %c0_24] : memref<8x1xf32, #tpu.memory_space<vmem>>, vector<8x1xf32>
      %39 = math.log %38 : vector<8x1xf32>
      %40 = arith.addf %37, %39 : vector<8x1xf32>
      %c0_25 = arith.constant 0 : index
      %c0_26 = arith.constant 0 : index
      %41 = vector.load %arg7[%c0_25, %c0_26] : memref<8x1xf32, #tpu.memory_space<vmem>>, vector<8x1xf32>
      %42 = arith.subf %40, %41 : vector<8x1xf32>
      %c8_i32 = arith.constant 8 : i32
      %43 = arith.muli %arg0, %c8_i32 : i32
      %44 = tpu.iota {dimensions = array<i32: 0>} : vector<8x1xi32>
      %45 = vector.broadcast %43 : i32 to vector<8x1xi32>
      %46 = arith.addi %45, %44 : vector<8x1xi32>
      %c8_i32_27 = arith.constant 8 : i32
      %47 = vector.broadcast %c8_i32_27 : i32 to vector<8x1xi32>
      %48 = arith.cmpi slt, %46, %47 : vector<8x1xi32>
      %cst_28 = arith.constant 0.000000e+00 : f32
      %49 = vector.broadcast %cst_28 : f32 to vector<8x1xf32>
      %50 = arith.select %48, %42, %49 : vector<8x1xi1>, vector<8x1xf32>
      %51 = vector.shape_cast %50 : vector<8x1xf32> to vector<1x8x1xf32>
      %cst_29 = arith.constant dense<0.000000e+00> : vector<1xf32>
      %52 = vector.multi_reduction <add>, %51, %cst_29 [1, 2] : vector<1x8x1xf32> to vector<1xf32>
      %53 = vector.shape_cast %52 : vector<1xf32> to vector<1x1x1xf32>
      %54 = vector.extract %53[0, 0, 0] : f32 from vector<1x1x1xf32>
      %55 = vector.broadcast %54 : f32 to vector<1x8x128xf32>
      %c0_30 = arith.constant 0 : index
      %c0_31 = arith.constant 0 : index
      %c0_32 = arith.constant 0 : index
      %56 = vector.load %arg4[%c0_30, %c0_31, %c0_32] : memref<1x8x128xf32, #tpu.memory_space<vmem>>, vector<1x8x128xf32>
      tpu.vector_store %arg4[%c0_30, %c0_31, %c0_32], %55 {strides = array<i32>} : memref<1x8x128xf32, #tpu.memory_space<vmem>>, vector<1x8x128xf32>,
    } else {
    }
    return
  }
  func.func @transform_0(%arg0: i32, %arg1: i32) -> (i32, i32) {
    %c0_i32 = arith.constant 0 : i32
    return %arg0, %arg1 : i32, i32
  }
  func.func @transform_1(%arg0: i32, %arg1: i32) -> (i32, i32) {
    %c0_i32 = arith.constant 0 : i32
    %c0_i32_0 = arith.constant 0 : i32
    return %arg0, %c0_i32 : i32, i32
  }
  func.func @transform_2(%arg0: i32, %arg1: i32) -> (i32, i32, i32) {
    %c0_i32 = arith.constant 0 : i32
    %c0_i32_0 = arith.constant 0 : i32
    %c0_i32_1 = arith.constant 0 : i32
    return %arg0, %c0_i32, %c0_i32_0 : i32, i32, i32
  }
}

</mosaic_0001>

<llo_original>
// kernel: tpu_custom_call.1
$region0: #{tpu_custom_call.1}
  #allocation0 [shape = 'u32[]', space=smem, size = 0x4, offset = 0x4, fixed_abs, tag = 'smem constant byte address 0x4 - core index']
  #allocation1 [shape = 'u32[72,128]{1,0:T(1,128)}', space=vmem, size = 0x9000, scoped, tag = 'internal scratch']
  #allocation2 [shape = 'f32[8,1]{1,0:T(8,128)}', space=vmem, size = 0x1000, scoped, tag = 'scratch operand']
  #allocation3 [shape = 'f32[8,1]{1,0:T(8,128)}', space=vmem, size = 0x1000, scoped, tag = 'scratch operand']
  #allocation4 [shape = 'f32[8,1]{1,0:T(8,128)}', space=vmem, size = 0x1000, scoped, tag = 'scratch operand']
  %s0 = inlined_call_operand.vmem [shape: f32[8,32], index: 0, kind: input, shape index: {}]
  %s1 = inlined_call_operand.vmem [shape: s32[8,1], index: 1, kind: input, shape index: {}]
  %s2 = inlined_call_operand.hbm [shape: f32[1,8,128], index: 2, kind: output, shape index: {}]
  %s3 = sld [smem:[#allocation0]]
  $region26: #{tpu_custom_call.1} parent=0
    _
  %s5 = ssub.s32 1, %s3
  %s6 = scalar_select 0, %s5, %s3
  $region1: #{tpu_custom_call.1} parent=0
    #allocation5 [shape = 'u8[4096]{0}', space=vmem, size = 0x1000, scoped, tag = 'output window, operand 0, single buffered']
    #allocation6 [shape = 's32[1]{0}', space=sflag, size = 0x4, scoped, tag = 'scoped memory for tpu_custom_call.1']
    %7 = vsyncpa [#allocation6], 0
    // Predicated region
    $region2: #{tpu_custom_call.1} parent=1 // pred_check
      _
    $region3: #{tpu_custom_call.1} parent=1 // pred_check_branch
      %9 = sbr.rel (0) target = $region5
    $region4: #{tpu_custom_call.1} parent=1 // pred_region
      _
    $region5: #{tpu_custom_call.1} parent=1 // pred_fallthru
      _
    // Predicated region
    $region6: #{tpu_custom_call.1} parent=1 // pred_check
      _
    $region7: #{tpu_custom_call.1} parent=1 // pred_check_branch
      %11 = sbr.rel (0) target = $region9
    $region8: #{tpu_custom_call.1} parent=1 // pred_region
      _
    $region9: #{tpu_custom_call.1} parent=1 // pred_fallthru
      _
    %p12 = scmp.eq.s32.totalorder 0, 0
    // Predicated region
    $region10: #{tpu_custom_call.1} parent=1 // pred_check
      %p13 = pneg %p12
    $region11: #{tpu_custom_call.1} parent=1 // pred_check_branch
      %15 = sbr.rel (%p13) target = $region13
    $region12: #{tpu_custom_call.1} parent=1 // pred_region
      %vm16 = vcmask 7168
      %17 = vst.msk [vmem:[#allocation2] sm:$0xff] %vm16, -inf
      %18 = vst.msk [vmem:[#allocation3] sm:$0xff] %vm16, 0.0
      %19 = vst.msk [vmem:[#allocation4] sm:$0xff] %vm16, 0.0
    $region13: #{tpu_custom_call.1} parent=1 // pred_fallthru
      _
    %v20 = vld [vmem:[%s0] sm:$0xff]
    %v21 = vld [vmem:[%s1] sm:$0xff]
    %s22 = smul.u32 0, 32
    %v23 = vlaneseq
    %v24 = vand.u32 %v23, 127
    %v25 = vstv %s22
    %v26 = vadd.s32 %v25, %v24
    %27 = vset.pattern.permute.xlu0 0
    %28 = vperm.xlu0 %27, %v21
    %v29 = vpop.permute.xlu0 %28
    %vm30 = vcmp.eq.s32.totalorder %v26, %v29
    %v31 = vld [vmem:[#allocation4] sm:$0xff]
    %v32 = vsel %vm30, %v20, 0.0
    %vm33 = vcmask 261120
    %v34 = vsel %vm33, %v32, 0.0
    %35 = vadd.xlane.f32.xlu0 %v34
    %v36 = vpop.xlane.xlu0 %35
    %v37 = vadd.f32 %v31, %v36
    %vm38 = vcmask 7168
    %39 = vst.msk [vmem:[#allocation4] sm:$0xff] %vm38, %v37
    %v40 = vld [vmem:[#allocation2] sm:$0xff]
    %v41 = vsel %vm33, %v20, -inf
    %42 = vmax.xlane.f32.xlu0 %v41
    %v43 = vpop.xlane.xlu0 %42
    %v44 = vmax.f32 %v40, %v43
    %v45 = vld [vmem:[#allocation3] sm:$0xff]
    %v46 = vsub.f32 %v40, %v44
    %v47 = vmul.f32 %v46, 1.442695
    %v48 = vpow.pop %v47
    %v49 = vmul.f32 %v45, %v48
    %51 = vset.pattern.permute.xlu0 0
    %52 = vperm.xlu0 %51, %v44
    %v53 = vpop.permute.xlu0 %52
    %v55 = vsub.f32 %v20, %v53
    %v56 = vmul.f32 %v55, 1.442695
    %v57 = vpow.pop %v56
    %v58 = vsel %vm33, %v57, 0.0
    %59 = vadd.xlane.f32.xlu0 %v58
    %v60 = vpop.xlane.xlu0 %59
    %v61 = vadd.f32 %v49, %v60
    %62 = vst.msk [vmem:[#allocation3] sm:$0xff] %vm38, %v61
    %63 = vst.msk [vmem:[#allocation2] sm:$0xff] %vm38, %v44
    // Predicated region
    $region14: #{tpu_custom_call.1} parent=1 // pred_check
      %p64 = pneg %p12
    $region15: #{tpu_custom_call.1} parent=1 // pred_check_branch
      %66 = sbr.rel (%p64) target = $region17
    $region16: #{tpu_custom_call.1} parent=1 // pred_region
      %v67 = vld [vmem:[#allocation2] sm:$0xff]
      %v68 = vld [vmem:[#allocation3] sm:$0xff]
      %v69 = vlog2.pop %v68
      %v70 = vmul.f32 %v69, 0.6931472
      %v71 = vadd.f32 %v67, %v70
      %v72 = vld [vmem:[#allocation4] sm:$0xff]
      %v73 = vsub.f32 %v71, %v72
      %s74 = smul.u32 0, 8
      %v75 = vlaneseq
      %v76 = vshrl.u32 %v75, 7
      %v77 = vstv %s74
      %v78 = vadd.s32 %v77, %v76
      %vm79 = vcmp.lt.s32.totalorder %v78, 8
      %v80 = vsel %vm79, %v73, 0.0
      %v81 = vsel %vm38, %v80, 0.0
      %82 = vadd.xlane.f32.xlu0 %v81
      %v83 = vpop.xlane.xlu0 %82
      %v84 = vrot.slane %v83, 4
      %v85 = vadd.f32 %v83, %v84
      %v86 = vrot.slane %v85, 2
      %v87 = vadd.f32 %v85, %v86
      %v88 = vrot.slane %v87, 1
      %v89 = vadd.f32 %v87, %v88
      %s90 = vtos %v89
      %v91 = vstv %s90
      %92 = vst [vmem:[#allocation5] sm:$0xff] %v91
    $region17: #{tpu_custom_call.1} parent=1 // pred_fallthru
      _
    // Predicated region
    $region18: #{tpu_custom_call.1} parent=1 // pred_check
      _
    $region19: #{tpu_custom_call.1} parent=1 // pred_check_branch
      %94 = sbr.rel (0) target = $region21
    $region20: #{tpu_custom_call.1} parent=1 // pred_region
      %96 = vsyncadd [#allocation6], 0
      %s98 = sshll.u32 [#allocation5], 4
      %s99 = int_to_ptr.vmem [resolvable:$true] %s98
      %s100 = sshll.u32 %s2, 4
      %s101 = int_to_ptr.hbm [resolvable:$true] %s100
      %103 = dma.vmem_to_hbm [thread:$0]  %s99, 128, %s101, [#allocation6]
    $region21: #{tpu_custom_call.1} parent=1 // pred_fallthru
      _
    // Predicated region
    $region22: #{tpu_custom_call.1} parent=1 // pred_check
      _
    $region23: #{tpu_custom_call.1} parent=1 // pred_check_branch
      %105 = sbr.rel (0) target = $region25
    $region24: #{tpu_custom_call.1} parent=1 // pred_region
      %107 = dma.done [#allocation6], 128
    $region25: #{tpu_custom_call.1} parent=1 // pred_fallthru
      _
    %108 = vsyncpa [#allocation6], 1

</llo_original>
